<compile_context>
chip_gen: v7x
topology: tpu7x:2x2x1
jax: 0.10.0
libtpu: 0.0.40
codegen_flags: <defaults>
</compile_context>

<pallas_src>
import functools

import jax
import jax.numpy as jnp
from jax.experimental import pallas as pl
from jax.experimental.pallas import tpu as pltpu

P_DROP = 0.8          # nn.Dropout(p=0.8)
_NEG_INF = -1e30      # bias for padded logit columns (softmax-safe, finite)
LANE = 128


def simplenet_kernel(x_ref, *refs, training, discrete_outputs, matmul_dtype):
    """One batch tile: fc1 -> dropout -> relu -> fc2 -> dropout -> relu -> fc3 (-> softmax)."""
    if training:
        m1_ref, m2_ref, *refs = refs
    w1_ref, b1_ref, w2_ref, b2_ref, w3_ref, b3_ref, o_ref = refs

    x = x_ref[...]  # (TB, inputs_no) f32

    # fc1 -> dropout -> relu
    h1 = jnp.dot(x.astype(matmul_dtype), w1_ref[...],
                 preferred_element_type=jnp.float32) + b1_ref[...]
    if training:
        h1 = h1 * m1_ref[...]          # mask already carries the 1/(1-p) scale
    h1 = jnp.maximum(h1, 0.0)

    # fc2 -> dropout -> relu
    h2 = jnp.dot(h1.astype(matmul_dtype), w2_ref[...],
                 preferred_element_type=jnp.float32) + b2_ref[...]
    if training:
        h2 = h2 * m2_ref[...]
    h2 = jnp.maximum(h2, 0.0)

    # fc3 (+ softmax over the feature axis; padded columns carry a -1e30 bias -> exp==0)
    out = jnp.dot(h2.astype(matmul_dtype), w3_ref[...],
                  preferred_element_type=jnp.float32) + b3_ref[...]
    if discrete_outputs:
        m = jnp.max(out, axis=-1, keepdims=True)
        e = jnp.exp(out - m)
        out = e / jnp.sum(e, axis=-1, keepdims=True)

    o_ref[...] = out  # lane-dense (TB, 128*k) store


def simplenet_forward(x, params, *, training=True, discrete_outputs=True,
                      dropout_key=None, block_b=1024, matmul_dtype=jnp.bfloat16):
    """x: (B, inputs_no) float32. params: dict of w1,b1,w2,b2,w3,b3 (weights (in,out), biases (1,out))."""
    B, inputs_no = x.shape
    h1_no = params["w1"].shape[1]
    h2_no = params["w2"].shape[1]
    out_no = params["w3"].shape[1]

    # ---- batch tiling: big tiles amortize per-step overhead; pad B to a tile multiple ----
    tb = 8 * pl.cdiv(B, 8) if B <= block_b else block_b
    n_blocks = pl.cdiv(B, tb)
    b_pad = tb * n_blocks
    if b_pad != B:
        x = jnp.pad(x, ((0, b_pad - B), (0, 0)))

    # ---- lane-dense output: pad fc3 columns up to a multiple of 128 ----
    out_pad = LANE * pl.cdiv(out_no, LANE)
    w3 = jnp.pad(params["w3"], ((0, 0), (0, out_pad - out_no)))
    b3 = jnp.pad(params["b3"], ((0, 0), (0, out_pad - out_no)),
                 constant_values=_NEG_INF if discrete_outputs else 0.0)

    # pre-cast weights for the MXU; biases / elementwise math stay f32
    w1 = params["w1"].astype(matmul_dtype)
    w2 = params["w2"].astype(matmul_dtype)
    w3 = w3.astype(matmul_dtype)
    b1 = params["b1"].astype(jnp.float32)
    b2 = params["b2"].astype(jnp.float32)
    b3 = b3.astype(jnp.float32)

    operands = [x]
    in_specs = [pl.BlockSpec((tb, inputs_no), lambda i: (i, 0))]

    if training:
        if dropout_key is None:
            raise ValueError("dropout_key is required when training=True")
        # TODO(synk): cannot bit-match torch's dropout RNG stream; Bernoulli(keep=1-p) with
        # 1/(1-p) scaling is reproduced exactly, masks generated host-side (TPU hardware PRNG
        # primitives do not lower under the CPU/interpret fallback used by the test harness).
        k1, k2 = jax.random.split(dropout_key)
        scale = jnp.float32(1.0 / (1.0 - P_DROP))
        m1 = jax.random.bernoulli(k1, 1.0 - P_DROP, (b_pad, h1_no)).astype(jnp.float32) * scale
        m2 = jax.random.bernoulli(k2, 1.0 - P_DROP, (b_pad, h2_no)).astype(jnp.float32) * scale
        operands += [m1, m2]
        in_specs += [pl.BlockSpec((tb, h1_no), lambda i: (i, 0)),
                     pl.BlockSpec((tb, h2_no), lambda i: (i, 0))]

    weights = [w1, b1, w2, b2, w3, b3]
    operands += weights
    in_specs += [pl.BlockSpec(w.shape, lambda i: (0, 0)) for w in weights]  # resident across grid

    kernel = functools.partial(simplenet_kernel, training=training,
                               discrete_outputs=discrete_outputs,
                               matmul_dtype=matmul_dtype)

    out = pl.pallas_call(
        kernel,
        out_shape=jax.ShapeDtypeStruct((b_pad, out_pad), jnp.float32),
        grid=(n_blocks,),
        in_specs=in_specs,
        out_specs=pl.BlockSpec((tb, out_pad), lambda i: (i, 0)),
        compiler_params=pltpu.CompilerParams(dimension_semantics=("parallel",)),
    )(*operands)

    return out[:B, :out_no]


def init_params(key, inputs_no, output_no):
    """Deterministic init mimicking nn.Linear default (uniform +/- 1/sqrt(fan_in))."""
    def linear(k, fan_in, fan_out):
        k1, k2 = jax.random.split(k)
        bound = 1.0 / jnp.sqrt(fan_in)
        w = jax.random.uniform(k1, (fan_in, fan_out), jnp.float32, -bound, bound)
        b = jax.random.uniform(k2, (1, fan_out), jnp.float32, -bound, bound)
        return w, b

    k1, k2, k3 = jax.random.split(key, 3)
    w1, b1 = linear(k1, inputs_no, 64)
    w2, b2 = linear(k2, 64, 32)
    w3, b3 = linear(k3, 32, output_no)
    return {"w1": w1, "b1": b1, "w2": w2, "b2": b2, "w3": w3, "b3": b3}


if __name__ == "__main__":
    inputs_no = 32
    output_no = 8
    batch = 8

    key = jax.random.PRNGKey(0)
    k_params, k_x, k_drop = jax.random.split(key, 3)
    params = init_params(k_params, inputs_no, output_no)
    x = jax.random.normal(k_x, (batch, inputs_no), jnp.float32)

    out = simplenet_forward(x, params, training=True, discrete_outputs=True,
                            dropout_key=k_drop)
    jax.block_until_ready(out)

    assert out.shape == (batch, output_no)
    # softmax rows must sum to 1
    assert bool(jnp.allclose(jnp.sum(out, axis=-1), 1.0, atol=1e-3))
    print("KERNEL_OK")
</pallas_src>

<mosaic_0001>
module attributes {stable_mosaic.version = 11 : i64} {
  func.func @simplenet_kernel(%arg0: i32, %arg1: memref<8x32xf32, #tpu.memory_space<vmem>>, %arg2: memref<8x64xf32, #tpu.memory_space<vmem>>, %arg3: memref<8x32xf32, #tpu.memory_space<vmem>>, %arg4: memref<32x64xbf16, #tpu.memory_space<vmem>>, %arg5: memref<1x64xf32, #tpu.memory_space<vmem>>, %arg6: memref<64x32xbf16, #tpu.memory_space<vmem>>, %arg7: memref<1x32xf32, #tpu.memory_space<vmem>>, %arg8: memref<32x128xbf16, #tpu.memory_space<vmem>>, %arg9: memref<1x128xf32, #tpu.memory_space<vmem>>, %arg10: memref<8x128xf32, #tpu.memory_space<vmem>>) attributes {dimension_semantics = [#tpu.dimension_semantics<parallel>], iteration_bounds = array<i64: 1>, scalar_prefetch = 0 : i64, scratch_operands = 0 : i64, tpu.core_type = #tpu.core_type<tc>, window_params = [{transform_indices = @transform_0, window_bounds = array<i64: 8, 32>}, {transform_indices = @transform_1, window_bounds = array<i64: 8, 64>}, {transform_indices = @transform_2, window_bounds = array<i64: 8, 32>}, {pipeline_mode = #tpu.pipeline_mode<synchronous>, transform_indices = @transform_3, window_bounds = array<i64: 32, 64>}, {pipeline_mode = #tpu.pipeline_mode<synchronous>, transform_indices = @transform_4, window_bounds = array<i64: 1, 64>}, {pipeline_mode = #tpu.pipeline_mode<synchronous>, transform_indices = @transform_5, window_bounds = array<i64: 64, 32>}, {pipeline_mode = #tpu.pipeline_mode<synchronous>, transform_indices = @transform_6, window_bounds = array<i64: 1, 32>}, {pipeline_mode = #tpu.pipeline_mode<synchronous>, transform_indices = @transform_7, window_bounds = array<i64: 32, 128>}, {pipeline_mode = #tpu.pipeline_mode<synchronous>, transform_indices = @transform_8, window_bounds = array<i64: 1, 128>}, {transform_indices = @transform_9, window_bounds = array<i64: 8, 128>}]} {
    %c0 = arith.constant 0 : index
    %c0_0 = arith.constant 0 : index
    %0 = vector.load %arg1[%c0, %c0_0] : memref<8x32xf32, #tpu.memory_space<vmem>>, vector<8x32xf32>
    %1 = arith.truncf %0 : vector<8x32xf32> to vector<8x32xbf16>
    %c0_1 = arith.constant 0 : index
    %c0_2 = arith.constant 0 : index
    %2 = vector.load %arg4[%c0_1, %c0_2] : memref<32x64xbf16, #tpu.memory_space<vmem>>, vector<32x64xbf16>
    %cst = arith.constant dense<0.000000e+00> : vector<8x64xf32>
    %3 = tpu.matmul %1, %2, %cst {dimension_numbers = #tpu.dot_dimension_numbers<[1], [0], [0], [1], [0, 0, 1, 1], [], []>} : vector<8x32xbf16>, vector<32x64xbf16>, vector<8x64xf32> -> vector<8x64xf32>
    %c0_3 = arith.constant 0 : index
    %c0_4 = arith.constant 0 : index
    %4 = vector.load %arg5[%c0_3, %c0_4] : memref<1x64xf32, #tpu.memory_space<vmem>>, vector<1x64xf32>
    %5 = vector.broadcast %4 : vector<1x64xf32> to vector<8x64xf32>
    %6 = arith.addf %3, %5 : vector<8x64xf32>
    %c0_5 = arith.constant 0 : index
    %c0_6 = arith.constant 0 : index
    %7 = vector.load %arg2[%c0_5, %c0_6] : memref<8x64xf32, #tpu.memory_space<vmem>>, vector<8x64xf32>
    %8 = arith.mulf %6, %7 : vector<8x64xf32>
    %cst_7 = arith.constant 0.000000e+00 : f32
    %9 = vector.broadcast %cst_7 : f32 to vector<8x64xf32>
    %10 = arith.maximumf %8, %9 : vector<8x64xf32>
    %11 = arith.truncf %10 : vector<8x64xf32> to vector<8x64xbf16>
    %c0_8 = arith.constant 0 : index
    %c0_9 = arith.constant 0 : index
    %12 = vector.load %arg6[%c0_8, %c0_9] : memref<64x32xbf16, #tpu.memory_space<vmem>>, vector<64x32xbf16>
    %cst_10 = arith.constant dense<0.000000e+00> : vector<8x32xf32>
    %13 = tpu.matmul %11, %12, %cst_10 {dimension_numbers = #tpu.dot_dimension_numbers<[1], [0], [0], [1], [0, 0, 1, 1], [], []>} : vector<8x64xbf16>, vector<64x32xbf16>, vector<8x32xf32> -> vector<8x32xf32>
    %c0_11 = arith.constant 0 : index
    %c0_12 = arith.constant 0 : index
    %14 = vector.load %arg7[%c0_11, %c0_12] : memref<1x32xf32, #tpu.memory_space<vmem>>, vector<1x32xf32>
    %15 = vector.broadcast %14 : vector<1x32xf32> to vector<8x32xf32>
    %16 = arith.addf %13, %15 : vector<8x32xf32>
    %c0_13 = arith.constant 0 : index
    %c0_14 = arith.constant 0 : index
    %17 = vector.load %arg3[%c0_13, %c0_14] : memref<8x32xf32, #tpu.memory_space<vmem>>, vector<8x32xf32>
    %18 = arith.mulf %16, %17 : vector<8x32xf32>
    %cst_15 = arith.constant 0.000000e+00 : f32
    %19 = vector.broadcast %cst_15 : f32 to vector<8x32xf32>
    %20 = arith.maximumf %18, %19 : vector<8x32xf32>
    %21 = arith.truncf %20 : vector<8x32xf32> to vector<8x32xbf16>
    %c0_16 = arith.constant 0 : index
    %c0_17 = arith.constant 0 : index
    %22 = vector.load %arg8[%c0_16, %c0_17] : memref<32x128xbf16, #tpu.memory_space<vmem>>, vector<32x128xbf16>
    %cst_18 = arith.constant dense<0.000000e+00> : vector<8x128xf32>
    %23 = tpu.matmul %21, %22, %cst_18 {dimension_numbers = #tpu.dot_dimension_numbers<[1], [0], [0], [1], [0, 0, 1, 1], [], []>} : vector<8x32xbf16>, vector<32x128xbf16>, vector<8x128xf32> -> vector<8x128xf32>
    %c0_19 = arith.constant 0 : index
    %c0_20 = arith.constant 0 : index
    %24 = vector.load %arg9[%c0_19, %c0_20] : memref<1x128xf32, #tpu.memory_space<vmem>>, vector<1x128xf32>
    %25 = vector.broadcast %24 : vector<1x128xf32> to vector<8x128xf32>
    %26 = arith.addf %23, %25 : vector<8x128xf32>
    %cst_21 = arith.constant dense<0xFF800000> : vector<8xf32>
    %27 = vector.multi_reduction <maximumf>, %26, %cst_21 [1] : vector<8x128xf32> to vector<8xf32>
    %28 = vector.shape_cast %27 : vector<8xf32> to vector<8x1xf32>
    %29 = vector.broadcast %28 : vector<8x1xf32> to vector<8x128xf32>
    %30 = arith.subf %26, %29 : vector<8x128xf32>
    %31 = math.exp %30 : vector<8x128xf32>
    %cst_22 = arith.constant dense<0.000000e+00> : vector<8xf32>
    %32 = vector.multi_reduction <add>, %31, %cst_22 [1] : vector<8x128xf32> to vector<8xf32>
    %33 = vector.shape_cast %32 : vector<8xf32> to vector<8x1xf32>
    %34 = vector.broadcast %33 : vector<8x1xf32> to vector<8x128xf32>
    %35 = arith.divf %31, %34 : vector<8x128xf32>
    %c0_23 = arith.constant 0 : index
    %c0_24 = arith.constant 0 : index
    %36 = vector.load %arg10[%c0_23, %c0_24] : memref<8x128xf32, #tpu.memory_space<vmem>>, vector<8x128xf32>
    tpu.vector_store %arg10[%c0_23, %c0_24], %35 {strides = array<i32>} : memref<8x128xf32, #tpu.memory_space<vmem>>, vector<8x128xf32>,
    return
  }
  func.func @transform_0(%arg0: i32) -> (i32, i32) {
    %c0_i32 = arith.constant 0 : i32
    %c0_i32_0 = arith.constant 0 : i32
    return %arg0, %c0_i32 : i32, i32
  }
  func.func @transform_1(%arg0: i32) -> (i32, i32) {
    %c0_i32 = arith.constant 0 : i32
    %c0_i32_0 = arith.constant 0 : i32
    return %arg0, %c0_i32 : i32, i32
  }
  func.func @transform_2(%arg0: i32) -> (i32, i32) {
    %c0_i32 = arith.constant 0 : i32
    %c0_i32_0 = arith.constant 0 : i32
    return %arg0, %c0_i32 : i32, i32
  }
  func.func @transform_3(%arg0: i32) -> (i32, i32) {
    %c0_i32 = arith.constant 0 : i32
    %c0_i32_0 = arith.constant 0 : i32
    %c0_i32_1 = arith.constant 0 : i32
    return %c0_i32, %c0_i32_0 : i32, i32
  }
  func.func @transform_4(%arg0: i32) -> (i32, i32) {
    %c0_i32 = arith.constant 0 : i32
    %c0_i32_0 = arith.constant 0 : i32
    %c0_i32_1 = arith.constant 0 : i32
    return %c0_i32, %c0_i32_0 : i32, i32
  }
  func.func @transform_5(%arg0: i32) -> (i32, i32) {
    %c0_i32 = arith.constant 0 : i32
    %c0_i32_0 = arith.constant 0 : i32
    %c0_i32_1 = arith.constant 0 : i32
    return %c0_i32, %c0_i32_0 : i32, i32
  }
  func.func @transform_6(%arg0: i32) -> (i32, i32) {
    %c0_i32 = arith.constant 0 : i32
    %c0_i32_0 = arith.constant 0 : i32
    %c0_i32_1 = arith.constant 0 : i32
    return %c0_i32, %c0_i32_0 : i32, i32
  }
  func.func @transform_7(%arg0: i32) -> (i32, i32) {
    %c0_i32 = arith.constant 0 : i32
    %c0_i32_0 = arith.constant 0 : i32
    %c0_i32_1 = arith.constant 0 : i32
    return %c0_i32, %c0_i32_0 : i32, i32
  }
  func.func @transform_8(%arg0: i32) -> (i32, i32) {
    %c0_i32 = arith.constant 0 : i32
    %c0_i32_0 = arith.constant 0 : i32
    %c0_i32_1 = arith.constant 0 : i32
    return %c0_i32, %c0_i32_0 : i32, i32
  }
  func.func @transform_9(%arg0: i32) -> (i32, i32) {
    %c0_i32 = arith.constant 0 : i32
    %c0_i32_0 = arith.constant 0 : i32
    return %arg0, %c0_i32 : i32, i32
  }
}

</mosaic_0001>

<llo_original>
// kernel: tpu_custom_call.1
$region0: #{tpu_custom_call.1}
  #allocation0 [shape = 'u32[]', space=smem, size = 0x4, offset = 0x4, fixed_abs, tag = 'smem constant byte address 0x4 - core index']
  #allocation1 [shape = 'u32[144,128]{1,0:T(1,128)}', space=vmem, size = 0x12000, scoped, tag = 'internal scratch']
  %s0 = inlined_call_operand.vmem [shape: f32[8,32], index: 0, kind: input, shape index: {}]
  %s1 = inlined_call_operand.vmem [shape: f32[8,64], index: 1, kind: input, shape index: {}]
  %s2 = inlined_call_operand.hbm [shape: f32[8,32], index: 2, kind: input, shape index: {}]
  %s3 = inlined_call_operand.vmem [shape: bf16[32,64], index: 3, kind: input, shape index: {}]
  %s4 = inlined_call_operand.vmem [shape: f32[1,64], index: 4, kind: input, shape index: {}]
  %s5 = inlined_call_operand.vmem [shape: bf16[64,32], index: 5, kind: input, shape index: {}]
  %s6 = inlined_call_operand.vmem [shape: f32[1,32], index: 6, kind: input, shape index: {}]
  %s7 = inlined_call_operand.vmem [shape: bf16[32,128], index: 7, kind: input, shape index: {}]
  %s8 = inlined_call_operand.vmem [shape: f32[1,128], index: 8, kind: input, shape index: {}]
  %s9 = inlined_call_operand.hbm [shape: f32[8,128], index: 9, kind: output, shape index: {}]
  %s10 = sld [smem:[#allocation0]]
  $region50: #{tpu_custom_call.1} parent=0
    _
  %s12 = ssub.s32 1, %s10
  %s13 = scalar_select 0, %s12, %s10
  $region1: #{tpu_custom_call.1} parent=0
    #allocation2 [shape = 'u8[4096]{0}', space=vmem, size = 0x1000, scoped, tag = 'input window, operand 2, single buffered']
    #allocation3 [shape = 's32[1]{0}', space=sflag, size = 0x4, scoped, tag = 'scoped memory for tpu_custom_call.1']
    #allocation4 [shape = 's32[1]{0}', space=sflag, size = 0x4, scoped, tag = 'scoped memory for tpu_custom_call.1']
    #allocation5 [shape = 'u8[4096]{0}', space=vmem, size = 0x1000, scoped, tag = 'output window, operand 0, single buffered']
    %14 = vsyncpa [#allocation3], 0
    %15 = vsyncpa [#allocation4], 0
    // Predicated region
    $region2: #{tpu_custom_call.1} parent=1 // pred_check
      _
    $region3: #{tpu_custom_call.1} parent=1 // pred_check_branch
      %17 = sbr.rel (0) target = $region5
    $region4: #{tpu_custom_call.1} parent=1 // pred_region
      _
    $region5: #{tpu_custom_call.1} parent=1 // pred_fallthru
      _
    // Predicated region
    $region6: #{tpu_custom_call.1} parent=1 // pred_check
      _
    $region7: #{tpu_custom_call.1} parent=1 // pred_check_branch
      %19 = sbr.rel (0) target = $region9
    $region8: #{tpu_custom_call.1} parent=1 // pred_region
      _
    $region9: #{tpu_custom_call.1} parent=1 // pred_fallthru
      _
    // Predicated region
    $region10: #{tpu_custom_call.1} parent=1 // pred_check
      _
    $region11: #{tpu_custom_call.1} parent=1 // pred_check_branch
      %21 = sbr.rel (0) target = $region13
    $region12: #{tpu_custom_call.1} parent=1 // pred_region
      %s23 = ssub.s32 128, 128
      %24 = vsyncadd [#allocation3], %s23
      %s26 = sshll.u32 [#allocation2], 4
      %s27 = int_to_ptr.vmem [resolvable:$true] %s26
      %29 = dma.hbm_to_vmem [thread:$0]  %s2, 128, %s27, [#allocation3]
    $region13: #{tpu_custom_call.1} parent=1 // pred_fallthru
      _
    // Predicated region
    $region14: #{tpu_custom_call.1} parent=1 // pred_check
      _
    $region15: #{tpu_custom_call.1} parent=1 // pred_check_branch
      %31 = sbr.rel (0) target = $region17
    $region16: #{tpu_custom_call.1} parent=1 // pred_region
      _
    $region17: #{tpu_custom_call.1} parent=1 // pred_fallthru
      _
    // Predicated region
    $region18: #{tpu_custom_call.1} parent=1 // pred_check
      _
    $region19: #{tpu_custom_call.1} parent=1 // pred_check_branch
      %33 = sbr.rel (0) target = $region21
    $region20: #{tpu_custom_call.1} parent=1 // pred_region
      _
    $region21: #{tpu_custom_call.1} parent=1 // pred_fallthru
      _
    // Predicated region
    $region22: #{tpu_custom_call.1} parent=1 // pred_check
      _
    $region23: #{tpu_custom_call.1} parent=1 // pred_check_branch
      %35 = sbr.rel (0) target = $region25
    $region24: #{tpu_custom_call.1} parent=1 // pred_region
      _
    $region25: #{tpu_custom_call.1} parent=1 // pred_fallthru
      _
    // Predicated region
    $region26: #{tpu_custom_call.1} parent=1 // pred_check
      _
    $region27: #{tpu_custom_call.1} parent=1 // pred_check_branch
      %37 = sbr.rel (0) target = $region29
    $region28: #{tpu_custom_call.1} parent=1 // pred_region
      _
    $region29: #{tpu_custom_call.1} parent=1 // pred_fallthru
      _
    // Predicated region
    $region30: #{tpu_custom_call.1} parent=1 // pred_check
      _
    $region31: #{tpu_custom_call.1} parent=1 // pred_check_branch
      %39 = sbr.rel (0) target = $region33
    $region32: #{tpu_custom_call.1} parent=1 // pred_region
      _
    $region33: #{tpu_custom_call.1} parent=1 // pred_fallthru
      _
    // Predicated region
    $region34: #{tpu_custom_call.1} parent=1 // pred_check
      _
    $region35: #{tpu_custom_call.1} parent=1 // pred_check_branch
      %41 = sbr.rel (0) target = $region37
    $region36: #{tpu_custom_call.1} parent=1 // pred_region
      _
    $region37: #{tpu_custom_call.1} parent=1 // pred_fallthru
      _
    // Predicated region
    $region38: #{tpu_custom_call.1} parent=1 // pred_check
      _
    $region39: #{tpu_custom_call.1} parent=1 // pred_check_branch
      %43 = sbr.rel (0) target = $region41
    $region40: #{tpu_custom_call.1} parent=1 // pred_region
      %44 = dma.done [#allocation3], 128
    $region41: #{tpu_custom_call.1} parent=1 // pred_fallthru
      _
    %v46 = vld [vmem:[%s0] sm:$0xff]
    %v47 = vpack.c.bf16 %v46, %v46
    %v48 = vld [vmem:[%s3] sm:$0xf]
    %v49 = vld [vmem:[%s3 + $0x4] sm:$0xf]
    %v50 = vld [vmem:[%s3 + $0x8] sm:$0xf]
    %v51 = vld [vmem:[%s3 + $0xc] sm:$0xf]
    %v52 = vld [vmem:[%s4] sm:$0x1]
    %v54 = vlaneseq
    %v55 = vshrl.u32 %v54, 7
    %v56 = vsub.s32 0, %v55
    %v57 = vrot.slane %v52, %v56
    %v63 = vunpack.c.l.b16 %v48
    %v64 = vunpack.c.l.b16 %v49
    %v65 = vunpack.c.l.b16 %v50
    %v66 = vunpack.c.l.b16 %v51
    %v67 = vpack.c.b16 %v64, %v63
    %v68 = vpack.c.b16 %v66, %v65
    %vm71 = vcmask 261120
    %v73 = vsel %vm71, %v47, 0
    %75 = vmatprep.subr.bf16.mxu0 0
    %76 = vmatpush1.bf16.msra.mxu0 %v67
    %77 = vmatprep.subr.bf16.mxu0 0
    %78 = vmatpush1.bf16.msra.mxu0 %v68
    %79 = vmatprep.subr.bf16.mxu0 0
    %80 = vmatpush1.bf16.msra.mxu0 0
    %81 = vmatprep.subr.bf16.mxu0 0
    %82 = vmatpush1.bf16.msra.mxu0 0
    %83 = vmatprep.subr.bf16.mxu0 0
    %84 = vmatpush1.bf16.msra.mxu0 0
    %85 = vmatprep.subr.bf16.mxu0 0
    %86 = vmatpush1.bf16.msra.mxu0 0
    %87 = vmatprep.subr.bf16.mxu0 0
    %88 = vmatpush1.bf16.msra.mxu0 0
    %89 = vmatprep.subr.bf16.mxu0 0
    %90 = vmatpush1.bf16.msra.mxu0 0
    %91 = vmatprep.subr.bf16.mxu0 0
    %92 = vmatpush1.bf16.msra.mxu0 0
    %93 = vmatprep.subr.bf16.mxu0 0
    %94 = vmatpush1.bf16.msra.mxu0 0
    %95 = vmatprep.subr.bf16.mxu0 0
    %96 = vmatpush1.bf16.msra.mxu0 0
    %97 = vmatprep.subr.bf16.mxu0 0
    %98 = vmatpush1.bf16.msra.mxu0 0
    %99 = vmatprep.subr.bf16.mxu0 0
    %100 = vmatpush1.bf16.msra.mxu0 0
    %101 = vmatprep.subr.bf16.mxu0 0
    %102 = vmatpush1.bf16.msra.mxu0 0
    %103 = vmatprep.subr.bf16.mxu0 0
    %104 = vmatpush1.bf16.msra.mxu0 0
    %105 = vmatprep.subr.bf16.mxu0 0
    %106 = vmatpush1.bf16.msra.mxu0 0
    %107 = vmatprep.mubr.bf16.mxu0 0
    %108 = vmatmul.mubr.bf16.gmra.mrb[0].mxu0 %v73
    %v109 = vpop.f32.mrb[0].mxu0
    %v110 = vadd.f32 %v57, %v109
    %v111 = vpop.f32.mrb[0].mxu0
    %v112 = vpop.f32.mrb[0].mxu0
    %v113 = vpop.f32.mrb[0].mxu0
    %114 = vdwg.mxu0
    %v115 = vld [vmem:[%s1] sm:$0xff]
    %v116 = vmul.f32 %v110, %v115
    %v117 = vmax.f32 %v116, 0.0
    %v118 = vpack.c.bf16 %v117, %v117
    %v119 = vld [vmem:[%s5] sm:$0xf]
    %v120 = vld [vmem:[%s5 + $0x4] sm:$0xf]
    %v121 = vld [vmem:[%s5 + $0x8] sm:$0xf]
    %v122 = vld [vmem:[%s5 + $0xc] sm:$0xf]
    %v123 = vld [vmem:[%s5 + $0x10] sm:$0xf]
    %v124 = vld [vmem:[%s5 + $0x14] sm:$0xf]
    %v125 = vld [vmem:[%s5 + $0x18] sm:$0xf]
    %v126 = vld [vmem:[%s5 + $0x1c] sm:$0xf]
    %v127 = vld [vmem:[%s6] sm:$0x1]
    %v129 = vlaneseq
    %v130 = vshrl.u32 %v129, 7
    %v131 = vsub.s32 0, %v130
    %v132 = vrot.slane %v127, %v131
    %v142 = vunpack.c.l.b16 %v119
    %v143 = vunpack.c.l.b16 %v120
    %v144 = vunpack.c.l.b16 %v121
    %v145 = vunpack.c.l.b16 %v122
    %v146 = vunpack.c.l.b16 %v123
    %v147 = vunpack.c.l.b16 %v124
    %v148 = vunpack.c.l.b16 %v125
    %v149 = vunpack.c.l.b16 %v126
    %v150 = vpack.c.b16 %v143, %v142
    %v151 = vpack.c.b16 %v145, %v144
    %v152 = vpack.c.b16 %v147, %v146
    %v153 = vpack.c.b16 %v149, %v148
    %vm158 = vcmask 523264
    %v160 = vsel %vm158, %v118, 0
    %162 = vmatprep.subr.bf16.mxu0 0
    %163 = vmatpush1.bf16.msra.mxu0 %v150
    %164 = vmatprep.subr.bf16.mxu0 0
    %165 = vmatpush1.bf16.msra.mxu0 %v151
    %166 = vmatprep.subr.bf16.mxu0 0
    %167 = vmatpush1.bf16.msra.mxu0 %v152
    %168 = vmatprep.subr.bf16.mxu0 0
    %169 = vmatpush1.bf16.msra.mxu0 %v153
    %170 = vmatprep.subr.bf16.mxu0 0
    %171 = vmatpush1.bf16.msra.mxu0 0
    %172 = vmatprep.subr.bf16.mxu0 0
    %173 = vmatpush1.bf16.msra.mxu0 0
    %174 = vmatprep.subr.bf16.mxu0 0
    %175 = vmatpush1.bf16.msra.mxu0 0
    %176 = vmatprep.subr.bf16.mxu0 0
    %177 = vmatpush1.bf16.msra.mxu0 0
    %178 = vmatprep.subr.bf16.mxu0 0
    %179 = vmatpush1.bf16.msra.mxu0 0
    %180 = vmatprep.subr.bf16.mxu0 0
    %181 = vmatpush1.bf16.msra.mxu0 0
    %182 = vmatprep.subr.bf16.mxu0 0
    %183 = vmatpush1.bf16.msra.mxu0 0
    %184 = vmatprep.subr.bf16.mxu0 0
    %185 = vmatpush1.bf16.msra.mxu0 0
    %186 = vmatprep.subr.bf16.mxu0 0
    %187 = vmatpush1.bf16.msra.mxu0 0
    %188 = vmatprep.subr.bf16.mxu0 0
    %189 = vmatpush1.bf16.msra.mxu0 0
    %190 = vmatprep.subr.bf16.mxu0 0
    %191 = vmatpush1.bf16.msra.mxu0 0
    %192 = vmatprep.subr.bf16.mxu0 0
    %193 = vmatpush1.bf16.msra.mxu0 0
    %194 = vmatprep.mubr.bf16.mxu0 0
    %195 = vmatmul.mubr.bf16.gmra.mrb[0].mxu0 %v160
    %v196 = vpop.f32.mrb[0].mxu0
    %v197 = vadd.f32 %v132, %v196
    %v198 = vpop.f32.mrb[0].mxu0
    %v199 = vpop.f32.mrb[0].mxu0
    %v200 = vpop.f32.mrb[0].mxu0
    %201 = vdwg.mxu0
    %v202 = vld [vmem:[#allocation2] sm:$0xff]
    %v203 = vmul.f32 %v197, %v202
    %v204 = vmax.f32 %v203, 0.0
    %v205 = vpack.c.bf16 %v204, %v204
    %v206 = vld [vmem:[%s7] sm:$0xf]
    %v207 = vld [vmem:[%s7 + $0x4] sm:$0xf]
    %v208 = vld [vmem:[%s7 + $0x8] sm:$0xf]
    %v209 = vld [vmem:[%s7 + $0xc] sm:$0xf]
    %v210 = vld [vmem:[%s8] sm:$0x1]
    %v212 = vlaneseq
    %v213 = vshrl.u32 %v212, 7
    %v214 = vsub.s32 0, %v213
    %v215 = vrot.slane %v210, %v214
    %v221 = vunpack.c.l.b16 %v206
    %v222 = vunpack.c.l.b16 %v207
    %v223 = vunpack.c.l.b16 %v208
    %v224 = vunpack.c.l.b16 %v209
    %v225 = vpack.c.b16 %v222, %v221
    %v226 = vpack.c.b16 %v224, %v223
    %v230 = vsel %vm71, %v205, 0
    %232 = vmatprep.subr.bf16.mxu0 0
    %233 = vmatpush1.bf16.msra.mxu0 %v225
    %234 = vmatprep.subr.bf16.mxu0 0
    %235 = vmatpush1.bf16.msra.mxu0 %v226
    %236 = vmatprep.subr.bf16.mxu0 0
    %237 = vmatpush1.bf16.msra.mxu0 0
    %238 = vmatprep.subr.bf16.mxu0 0
    %239 = vmatpush1.bf16.msra.mxu0 0
    %240 = vmatprep.subr.bf16.mxu0 0
    %241 = vmatpush1.bf16.msra.mxu0 0
    %242 = vmatprep.subr.bf16.mxu0 0
    %243 = vmatpush1.bf16.msra.mxu0 0
    %244 = vmatprep.subr.bf16.mxu0 0
    %245 = vmatpush1.bf16.msra.mxu0 0
    %246 = vmatprep.subr.bf16.mxu0 0
    %247 = vmatpush1.bf16.msra.mxu0 0
    %248 = vmatprep.subr.bf16.mxu0 0
    %249 = vmatpush1.bf16.msra.mxu0 0
    %250 = vmatprep.subr.bf16.mxu0 0
    %251 = vmatpush1.bf16.msra.mxu0 0
    %252 = vmatprep.subr.bf16.mxu0 0
    %253 = vmatpush1.bf16.msra.mxu0 0
    %254 = vmatprep.subr.bf16.mxu0 0
    %255 = vmatpush1.bf16.msra.mxu0 0
    %256 = vmatprep.subr.bf16.mxu0 0
    %257 = vmatpush1.bf16.msra.mxu0 0
    %258 = vmatprep.subr.bf16.mxu0 0
    %259 = vmatpush1.bf16.msra.mxu0 0
    %260 = vmatprep.subr.bf16.mxu0 0
    %261 = vmatpush1.bf16.msra.mxu0 0
    %262 = vmatprep.subr.bf16.mxu0 0
    %263 = vmatpush1.bf16.msra.mxu0 0
    %264 = vmatprep.mubr.bf16.mxu0 0
    %265 = vmatmul.mubr.bf16.gmra.mrb[0].mxu0 %v230
    %v266 = vpop.f32.mrb[0].mxu0
    %v267 = vadd.f32 %v215, %v266
    %v268 = vpop.f32.mrb[0].mxu0
    %v269 = vpop.f32.mrb[0].mxu0
    %v270 = vpop.f32.mrb[0].mxu0
    %271 = vdwg.mxu0
    %272 = vmax.xlane.f32.xlu0 %v267
    %v273 = vpop.xlane.xlu0 %272
    %v274 = vsub.f32 %v267, %v273
    %v275 = vmul.f32 %v274, 1.442695
    %v276 = vpow.pop %v275
    %277 = vadd.xlane.f32.xlu0 %v276
    %v278 = vpop.xlane.xlu0 %277
    %v279 = vrcp.pop %v278
    %v280 = vmul.f32 %v276, %v279
    %281 = vst [vmem:[#allocation5] sm:$0xff] %v280
    // Predicated region
    $region42: #{tpu_custom_call.1} parent=1 // pred_check
      _
    $region43: #{tpu_custom_call.1} parent=1 // pred_check_branch
      %283 = sbr.rel (0) target = $region45
    $region44: #{tpu_custom_call.1} parent=1 // pred_region
      %s285 = ssub.s32 128, 128
      %286 = vsyncadd [#allocation4], %s285
      %s288 = sshll.u32 [#allocation5], 4
      %s289 = int_to_ptr.vmem [resolvable:$true] %s288
      %291 = dma.vmem_to_hbm [thread:$0]  %s289, 128, %s9, [#allocation4]
    $region45: #{tpu_custom_call.1} parent=1 // pred_fallthru
      _
    // Predicated region
    $region46: #{tpu_custom_call.1} parent=1 // pred_check
      _
    $region47: #{tpu_custom_call.1} parent=1 // pred_check_branch
      %293 = sbr.rel (0) target = $region49
    $region48: #{tpu_custom_call.1} parent=1 // pred_region
      %294 = dma.done [#allocation4], 128
    $region49: #{tpu_custom_call.1} parent=1 // pred_fallthru
      _
    %295 = vsyncpa [#allocation3], 1
    %296 = vsyncpa [#allocation4], 1

</llo_original>
